<compile_context>
chip_gen: v6e
topology: v6e:2x2x1
jax: 0.10.0
libtpu: 0.0.40
codegen_flags: <defaults>
</compile_context>

<pallas_src>
import functools

import jax
import jax.numpy as jnp
from jax import lax
from jax.experimental import pallas as pl
from jax.experimental.pallas import tpu as pltpu


def _mha_fused_kernel(x_ref, w_ref, b_ref, o_ref, *, H, d_k, d_v, scale,
                      compute_dtype):
    # x_ref: (1, S, d_in)             current batch element
    # w_ref: (d_in, H*(2*d_k + d_v))  fused per-head QKV weights (resident)
    # b_ref: (1,    H*(2*d_k + d_v))  fused per-head QKV biases  (resident)
    # o_ref: (1, S, H*d_v)            lane-dense output block
    x = x_ref[0]                                                # (S, d_in)

    # One fused projection matmul for all heads and all of Q/K/V.
    qkv = jnp.dot(x.astype(compute_dtype), w_ref[...].astype(compute_dtype),
                  preferred_element_type=jnp.float32)
    qkv = qkv + b_ref[...]                                      # (S, H*(2dk+dv))

    Dq = H * d_k
    Dk = H * d_k
    q = qkv[:, :Dq] * scale      # fold 1/sqrt(d_k) into q, not the SxS scores
    k = qkv[:, Dq:Dq + Dk]
    v = qkv[:, Dq + Dk:]

    # TODO(synk): for large S, replace the SxS materialization below with a
    # KV-tile grid axis + online softmax (flash pattern) sized for VMEM.
    outs = []
    for h in range(H):           # static unroll over heads
        qh = q[:, h * d_k:(h + 1) * d_k].astype(compute_dtype)
        kh = k[:, h * d_k:(h + 1) * d_k].astype(compute_dtype)
        vh = v[:, h * d_v:(h + 1) * d_v].astype(compute_dtype)

        # q @ k^T without materializing a transpose: contract the last dims.
        s = lax.dot_general(qh, kh, (((1,), (1,)), ((), ())),
                            preferred_element_type=jnp.float32)     # (S, S)
        s = s - jnp.max(s, axis=-1, keepdims=True)                   # stable softmax
        p = jnp.exp(s)
        p = p * pl.reciprocal(jnp.sum(p, axis=-1, keepdims=True), approx=True)

        outs.append(jnp.dot(p.astype(compute_dtype), vh,
                            preferred_element_type=jnp.float32))     # (S, d_v)

    # Head h occupies lanes [h*d_v:(h+1)*d_v]  ==  torch.concat(result, dim=-1)
    o_ref[0] = jnp.concatenate(outs, axis=-1).astype(o_ref.dtype)


def multihead_attention(x, wq, bq, wk, bk, wv, bv, *,
                        compute_dtype=jnp.float32):
    """x: (B, S, d_in); wq/wk: (H, d_in, d_k); wv: (H, d_in, d_v);
       bq/bk: (H, d_k); bv: (H, d_v).  Returns (B, S, H*d_v) float32."""
    B, S, d_in = x.shape
    H, _, d_k = wq.shape
    d_v = wv.shape[-1]
    D_total = H * (2 * d_k + d_v)

    # Stack per-head weights along the lane axis:
    #   x @ wq_f -> (S, H*d_k) with head h in columns [h*d_k:(h+1)*d_k].
    wq_f = jnp.transpose(wq, (1, 0, 2)).reshape(d_in, H * d_k)
    wk_f = jnp.transpose(wk, (1, 0, 2)).reshape(d_in, H * d_k)
    wv_f = jnp.transpose(wv, (1, 0, 2)).reshape(d_in, H * d_v)
    w_qkv = jnp.concatenate([wq_f, wk_f, wv_f], axis=-1)        # (d_in, D_total)
    b_qkv = jnp.concatenate([bq.reshape(1, H * d_k),
                             bk.reshape(1, H * d_k),
                             bv.reshape(1, H * d_v)], axis=-1)  # (1, D_total)

    kernel = functools.partial(
        _mha_fused_kernel, H=H, d_k=d_k, d_v=d_v,
        scale=float(1.0 / (d_k ** 0.5)), compute_dtype=compute_dtype)

    cost = pl.CostEstimate(
        flops=2 * B * S * d_in * D_total + 2 * B * H * S * S * (d_k + d_v),
        transcendentals=B * H * S * S,
        bytes_accessed=4 * (B * S * d_in + d_in * D_total + D_total
                            + B * S * H * d_v),
    )

    return pl.pallas_call(
        kernel,
        out_shape=jax.ShapeDtypeStruct((B, S, H * d_v), jnp.float32),
        grid_spec=pltpu.PrefetchScalarGridSpec(
            num_scalar_prefetch=0,
            grid=(B,),                          # B >= 2 parallel steps (v7x: 2 TCs)
            in_specs=[
                pl.BlockSpec((1, S, d_in), lambda b: (b, 0, 0)),   # x (moves)
                pl.BlockSpec((d_in, D_total), lambda b: (0, 0)),   # W_qkv (resident)
                pl.BlockSpec((1, D_total), lambda b: (0, 0)),      # b_qkv (resident)
            ],
            out_specs=pl.BlockSpec((1, S, H * d_v), lambda b: (b, 0, 0)),
        ),
        compiler_params=pltpu.CompilerParams(
            dimension_semantics=("parallel",)),
        cost_estimate=cost,
    )(x, w_qkv, b_qkv)


def _reference(x, wq, bq, wk, bk, wv, bv, d_k):
    # pure-JAX reference of MultiheadAttentionLayer.forward
    outs = []
    H = wq.shape[0]
    for h in range(H):
        q = x @ wq[h] + bq[h]
        k = x @ wk[h] + bk[h]
        v = x @ wv[h] + bv[h]
        s = (q @ jnp.swapaxes(k, -2, -1)) / jnp.sqrt(jnp.float32(d_k))
        p = jax.nn.softmax(s, axis=-1)
        outs.append(p @ v)
    return jnp.concatenate(outs, axis=-1)


if __name__ == "__main__":
    # small, deterministic problem sizes
    B, S, d_in = 2, 8, 32
    d_k, d_v, H = 16, 16, 4

    key = jax.random.PRNGKey(0)
    kx, kwq, kbq, kwk, kbk, kwv, kbv = jax.random.split(key, 7)

    x = jax.random.normal(kx, (B, S, d_in), dtype=jnp.float32)
    # deterministic synthetic parameters (shapes of H independent nn.Linear layers)
    wq = jax.random.normal(kwq, (H, d_in, d_k), dtype=jnp.float32) * 0.1
    bq = jax.random.normal(kbq, (H, d_k), dtype=jnp.float32) * 0.1
    wk = jax.random.normal(kwk, (H, d_in, d_k), dtype=jnp.float32) * 0.1
    bk = jax.random.normal(kbk, (H, d_k), dtype=jnp.float32) * 0.1
    wv = jax.random.normal(kwv, (H, d_in, d_v), dtype=jnp.float32) * 0.1
    bv = jax.random.normal(kbv, (H, d_v), dtype=jnp.float32) * 0.1

    ref = _reference(x, wq, bq, wk, bk, wv, bv, d_k)

    # f32 MXU path (approx EUP reciprocal in softmax -> tolerance slightly loosened).
    out = jax.block_until_ready(multihead_attention(x, wq, bq, wk, bk, wv, bv))
    assert out.shape == (B, S, H * d_v), out.shape
    err = float(jnp.max(jnp.abs(out - ref)))
    assert err < 1e-2, err

    # bf16 MXU path (v6e/v7x native bf16; f32 softmax stats + f32 accumulation).
    out_bf16 = jax.block_until_ready(
        multihead_attention(x, wq, bq, wk, bk, wv, bv,
                            compute_dtype=jnp.bfloat16))
    err_bf16 = float(jnp.max(jnp.abs(out_bf16 - ref)))
    assert err_bf16 < 3e-2, err_bf16

    print("KERNEL_OK")
</pallas_src>

<mosaic_0001>
module attributes {stable_mosaic.version = 11 : i64} {
  func.func @_mha_fused_kernel(%arg0: i32, %arg1: memref<1x8x32xf32, #tpu.memory_space<vmem>>, %arg2: memref<32x192xf32, #tpu.memory_space<vmem>>, %arg3: memref<1x192xf32, #tpu.memory_space<vmem>>, %arg4: memref<1x8x64xf32, #tpu.memory_space<vmem>>) attributes {dimension_semantics = [#tpu.dimension_semantics<parallel>], iteration_bounds = array<i64: 2>, scalar_prefetch = 0 : i64, scratch_operands = 0 : i64, tpu.core_type = #tpu.core_type<tc>, window_params = [{transform_indices = @transform_0, window_bounds = array<i64: 1, 8, 32>}, {pipeline_mode = #tpu.pipeline_mode<synchronous>, transform_indices = @transform_1, window_bounds = array<i64: 32, 192>}, {pipeline_mode = #tpu.pipeline_mode<synchronous>, transform_indices = @transform_2, window_bounds = array<i64: 1, 192>}, {transform_indices = @transform_3, window_bounds = array<i64: 1, 8, 64>}]} {
    %c0 = arith.constant 0 : index
    %c0_0 = arith.constant 0 : index
    %c0_1 = arith.constant 0 : index
    %0 = vector.load %arg1[%c0, %c0_0, %c0_1] : memref<1x8x32xf32, #tpu.memory_space<vmem>>, vector<1x8x32xf32>
    %1 = vector.shape_cast %0 : vector<1x8x32xf32> to vector<8x32xf32>
    %c0_2 = arith.constant 0 : index
    %c0_3 = arith.constant 0 : index
    %2 = vector.load %arg2[%c0_2, %c0_3] : memref<32x192xf32, #tpu.memory_space<vmem>>, vector<32x192xf32>
    %cst = arith.constant dense<0.000000e+00> : vector<8x192xf32>
    %3 = tpu.matmul %1, %2, %cst {dimension_numbers = #tpu.dot_dimension_numbers<[1], [0], [0], [1], [0, 0, 1, 1], [], []>} : vector<8x32xf32>, vector<32x192xf32>, vector<8x192xf32> -> vector<8x192xf32>
    %c0_4 = arith.constant 0 : index
    %c0_5 = arith.constant 0 : index
    %4 = vector.load %arg3[%c0_4, %c0_5] : memref<1x192xf32, #tpu.memory_space<vmem>>, vector<1x192xf32>
    %5 = vector.broadcast %4 : vector<1x192xf32> to vector<8x192xf32>
    %6 = arith.addf %3, %5 : vector<8x192xf32>
    %7 = vector.extract_strided_slice %6 {offsets = [0, 0], sizes = [8, 64], strides = [1, 1]} : vector<8x192xf32> to vector<8x64xf32>
    %cst_6 = arith.constant 2.500000e-01 : f32
    %8 = vector.broadcast %cst_6 : f32 to vector<8x64xf32>
    %9 = arith.mulf %7, %8 : vector<8x64xf32>
    %10 = vector.extract_strided_slice %6 {offsets = [0, 64], sizes = [8, 64], strides = [1, 1]} : vector<8x192xf32> to vector<8x64xf32>
    %11 = vector.extract_strided_slice %6 {offsets = [0, 128], sizes = [8, 64], strides = [1, 1]} : vector<8x192xf32> to vector<8x64xf32>
    %12 = vector.extract_strided_slice %9 {offsets = [0, 0], sizes = [8, 16], strides = [1, 1]} : vector<8x64xf32> to vector<8x16xf32>
    %13 = vector.extract_strided_slice %10 {offsets = [0, 0], sizes = [8, 16], strides = [1, 1]} : vector<8x64xf32> to vector<8x16xf32>
    %14 = vector.extract_strided_slice %11 {offsets = [0, 0], sizes = [8, 16], strides = [1, 1]} : vector<8x64xf32> to vector<8x16xf32>
    %cst_7 = arith.constant dense<0.000000e+00> : vector<8x8xf32>
    %15 = tpu.matmul %12, %13, %cst_7 {dimension_numbers = #tpu.dot_dimension_numbers<[1], [1], [0], [0], [0, 0, 1, 0], [], []>} : vector<8x16xf32>, vector<8x16xf32>, vector<8x8xf32> -> vector<8x8xf32>
    %cst_8 = arith.constant dense<0xFF800000> : vector<8xf32>
    %16 = vector.multi_reduction <maximumf>, %15, %cst_8 [1] : vector<8x8xf32> to vector<8xf32>
    %17 = vector.shape_cast %16 : vector<8xf32> to vector<8x1xf32>
    %18 = vector.broadcast %17 : vector<8x1xf32> to vector<8x8xf32>
    %19 = arith.subf %15, %18 : vector<8x8xf32>
    %20 = math.exp %19 : vector<8x8xf32>
    %cst_9 = arith.constant dense<0.000000e+00> : vector<8xf32>
    %21 = vector.multi_reduction <add>, %20, %cst_9 [1] : vector<8x8xf32> to vector<8xf32>
    %22 = vector.shape_cast %21 : vector<8xf32> to vector<8x1xf32>
    %23 = tpu.reciprocal %22 {approx = true} : vector<8x1xf32> -> vector<8x1xf32>
    %24 = vector.broadcast %23 : vector<8x1xf32> to vector<8x8xf32>
    %25 = arith.mulf %20, %24 : vector<8x8xf32>
    %cst_10 = arith.constant dense<0.000000e+00> : vector<8x16xf32>
    %26 = tpu.matmul %25, %14, %cst_10 {dimension_numbers = #tpu.dot_dimension_numbers<[1], [0], [0], [1], [0, 0, 1, 1], [], []>} : vector<8x8xf32>, vector<8x16xf32>, vector<8x16xf32> -> vector<8x16xf32>
    %27 = vector.extract_strided_slice %9 {offsets = [0, 16], sizes = [8, 16], strides = [1, 1]} : vector<8x64xf32> to vector<8x16xf32>
    %28 = vector.extract_strided_slice %10 {offsets = [0, 16], sizes = [8, 16], strides = [1, 1]} : vector<8x64xf32> to vector<8x16xf32>
    %29 = vector.extract_strided_slice %11 {offsets = [0, 16], sizes = [8, 16], strides = [1, 1]} : vector<8x64xf32> to vector<8x16xf32>
    %cst_11 = arith.constant dense<0.000000e+00> : vector<8x8xf32>
    %30 = tpu.matmul %27, %28, %cst_11 {dimension_numbers = #tpu.dot_dimension_numbers<[1], [1], [0], [0], [0, 0, 1, 0], [], []>} : vector<8x16xf32>, vector<8x16xf32>, vector<8x8xf32> -> vector<8x8xf32>
    %cst_12 = arith.constant dense<0xFF800000> : vector<8xf32>
    %31 = vector.multi_reduction <maximumf>, %30, %cst_12 [1] : vector<8x8xf32> to vector<8xf32>
    %32 = vector.shape_cast %31 : vector<8xf32> to vector<8x1xf32>
    %33 = vector.broadcast %32 : vector<8x1xf32> to vector<8x8xf32>
    %34 = arith.subf %30, %33 : vector<8x8xf32>
    %35 = math.exp %34 : vector<8x8xf32>
    %cst_13 = arith.constant dense<0.000000e+00> : vector<8xf32>
    %36 = vector.multi_reduction <add>, %35, %cst_13 [1] : vector<8x8xf32> to vector<8xf32>
    %37 = vector.shape_cast %36 : vector<8xf32> to vector<8x1xf32>
    %38 = tpu.reciprocal %37 {approx = true} : vector<8x1xf32> -> vector<8x1xf32>
    %39 = vector.broadcast %38 : vector<8x1xf32> to vector<8x8xf32>
    %40 = arith.mulf %35, %39 : vector<8x8xf32>
    %cst_14 = arith.constant dense<0.000000e+00> : vector<8x16xf32>
    %41 = tpu.matmul %40, %29, %cst_14 {dimension_numbers = #tpu.dot_dimension_numbers<[1], [0], [0], [1], [0, 0, 1, 1], [], []>} : vector<8x8xf32>, vector<8x16xf32>, vector<8x16xf32> -> vector<8x16xf32>
    %42 = vector.extract_strided_slice %9 {offsets = [0, 32], sizes = [8, 16], strides = [1, 1]} : vector<8x64xf32> to vector<8x16xf32>
    %43 = vector.extract_strided_slice %10 {offsets = [0, 32], sizes = [8, 16], strides = [1, 1]} : vector<8x64xf32> to vector<8x16xf32>
    %44 = vector.extract_strided_slice %11 {offsets = [0, 32], sizes = [8, 16], strides = [1, 1]} : vector<8x64xf32> to vector<8x16xf32>
    %cst_15 = arith.constant dense<0.000000e+00> : vector<8x8xf32>
    %45 = tpu.matmul %42, %43, %cst_15 {dimension_numbers = #tpu.dot_dimension_numbers<[1], [1], [0], [0], [0, 0, 1, 0], [], []>} : vector<8x16xf32>, vector<8x16xf32>, vector<8x8xf32> -> vector<8x8xf32>
    %cst_16 = arith.constant dense<0xFF800000> : vector<8xf32>
    %46 = vector.multi_reduction <maximumf>, %45, %cst_16 [1] : vector<8x8xf32> to vector<8xf32>
    %47 = vector.shape_cast %46 : vector<8xf32> to vector<8x1xf32>
    %48 = vector.broadcast %47 : vector<8x1xf32> to vector<8x8xf32>
    %49 = arith.subf %45, %48 : vector<8x8xf32>
    %50 = math.exp %49 : vector<8x8xf32>
    %cst_17 = arith.constant dense<0.000000e+00> : vector<8xf32>
    %51 = vector.multi_reduction <add>, %50, %cst_17 [1] : vector<8x8xf32> to vector<8xf32>
    %52 = vector.shape_cast %51 : vector<8xf32> to vector<8x1xf32>
    %53 = tpu.reciprocal %52 {approx = true} : vector<8x1xf32> -> vector<8x1xf32>
    %54 = vector.broadcast %53 : vector<8x1xf32> to vector<8x8xf32>
    %55 = arith.mulf %50, %54 : vector<8x8xf32>
    %cst_18 = arith.constant dense<0.000000e+00> : vector<8x16xf32>
    %56 = tpu.matmul %55, %44, %cst_18 {dimension_numbers = #tpu.dot_dimension_numbers<[1], [0], [0], [1], [0, 0, 1, 1], [], []>} : vector<8x8xf32>, vector<8x16xf32>, vector<8x16xf32> -> vector<8x16xf32>
    %57 = vector.extract_strided_slice %9 {offsets = [0, 48], sizes = [8, 16], strides = [1, 1]} : vector<8x64xf32> to vector<8x16xf32>
    %58 = vector.extract_strided_slice %10 {offsets = [0, 48], sizes = [8, 16], strides = [1, 1]} : vector<8x64xf32> to vector<8x16xf32>
    %59 = vector.extract_strided_slice %11 {offsets = [0, 48], sizes = [8, 16], strides = [1, 1]} : vector<8x64xf32> to vector<8x16xf32>
    %cst_19 = arith.constant dense<0.000000e+00> : vector<8x8xf32>
    %60 = tpu.matmul %57, %58, %cst_19 {dimension_numbers = #tpu.dot_dimension_numbers<[1], [1], [0], [0], [0, 0, 1, 0], [], []>} : vector<8x16xf32>, vector<8x16xf32>, vector<8x8xf32> -> vector<8x8xf32>
    %cst_20 = arith.constant dense<0xFF800000> : vector<8xf32>
    %61 = vector.multi_reduction <maximumf>, %60, %cst_20 [1] : vector<8x8xf32> to vector<8xf32>
    %62 = vector.shape_cast %61 : vector<8xf32> to vector<8x1xf32>
    %63 = vector.broadcast %62 : vector<8x1xf32> to vector<8x8xf32>
    %64 = arith.subf %60, %63 : vector<8x8xf32>
    %65 = math.exp %64 : vector<8x8xf32>
    %cst_21 = arith.constant dense<0.000000e+00> : vector<8xf32>
    %66 = vector.multi_reduction <add>, %65, %cst_21 [1] : vector<8x8xf32> to vector<8xf32>
    %67 = vector.shape_cast %66 : vector<8xf32> to vector<8x1xf32>
    %68 = tpu.reciprocal %67 {approx = true} : vector<8x1xf32> -> vector<8x1xf32>
    %69 = vector.broadcast %68 : vector<8x1xf32> to vector<8x8xf32>
    %70 = arith.mulf %65, %69 : vector<8x8xf32>
    %cst_22 = arith.constant dense<0.000000e+00> : vector<8x16xf32>
    %71 = tpu.matmul %70, %59, %cst_22 {dimension_numbers = #tpu.dot_dimension_numbers<[1], [0], [0], [1], [0, 0, 1, 1], [], []>} : vector<8x8xf32>, vector<8x16xf32>, vector<8x16xf32> -> vector<8x16xf32>
    %72 = tpu.concatenate %26, %41, %56, %71 in 1 : vector<8x16xf32>, vector<8x16xf32>, vector<8x16xf32>, vector<8x16xf32> -> vector<8x64xf32>
    %c0_23 = arith.constant 0 : index
    %c0_24 = arith.constant 0 : index
    %c0_25 = arith.constant 0 : index
    %73 = vector.load %arg4[%c0_23, %c0_24, %c0_25] : memref<1x8x64xf32, #tpu.memory_space<vmem>>, vector<1x8x64xf32>
    %74 = vector.shape_cast %73 : vector<1x8x64xf32> to vector<8x64xf32>
    %75 = vector.shape_cast %72 : vector<8x64xf32> to vector<1x8x64xf32>
    tpu.vector_store %arg4[%c0_23, %c0_24, %c0_25], %75 {strides = array<i32>} : memref<1x8x64xf32, #tpu.memory_space<vmem>>, vector<1x8x64xf32>,
    return
  }
  func.func @transform_0(%arg0: i32) -> (i32, i32, i32) {
    %c0_i32 = arith.constant 0 : i32
    %c0_i32_0 = arith.constant 0 : i32
    %c0_i32_1 = arith.constant 0 : i32
    return %arg0, %c0_i32, %c0_i32_0 : i32, i32, i32
  }
  func.func @transform_1(%arg0: i32) -> (i32, i32) {
    %c0_i32 = arith.constant 0 : i32
    %c0_i32_0 = arith.constant 0 : i32
    %c0_i32_1 = arith.constant 0 : i32
    return %c0_i32, %c0_i32_0 : i32, i32
  }
  func.func @transform_2(%arg0: i32) -> (i32, i32) {
    %c0_i32 = arith.constant 0 : i32
    %c0_i32_0 = arith.constant 0 : i32
    %c0_i32_1 = arith.constant 0 : i32
    return %c0_i32, %c0_i32_0 : i32, i32
  }
  func.func @transform_3(%arg0: i32) -> (i32, i32, i32) {
    %c0_i32 = arith.constant 0 : i32
    %c0_i32_0 = arith.constant 0 : i32
    %c0_i32_1 = arith.constant 0 : i32
    return %arg0, %c0_i32, %c0_i32_0 : i32, i32, i32
  }
}

</mosaic_0001>

<llo_original>
// kernel: tpu_custom_call.1
$region0: #{tpu_custom_call.1}
  #allocation0 [shape = 'u32[]', space=smem, size = 0x4, offset = 0x4, fixed_abs, tag = 'smem constant byte address 0x4 - core index']
  #allocation1 [shape = 'u32[144,128]{1,0:T(1,128)}', space=vmem, size = 0x12000, scoped, tag = 'internal scratch']
  %s0 = inlined_call_operand.hbm [shape: f32[2,8,32], index: 0, kind: input, shape index: {}]
  %s1 = inlined_call_operand.hbm [shape: f32[32,192], index: 1, kind: input, shape index: {}]
  %s2 = inlined_call_operand.vmem [shape: f32[1,192], index: 2, kind: input, shape index: {}]
  %s3 = inlined_call_operand.hbm [shape: f32[2,8,64], index: 3, kind: output, shape index: {}]
  %s4 = sld [smem:[#allocation0]]
  $region53: #{tpu_custom_call.1} parent=0
    _
  %s6 = ssub.s32 1, %s4
  %s7 = scalar_select 0, %s6, %s4
  $region1: #{tpu_custom_call.1} parent=0
    #allocation2 [shape = 'u8[8192]{0}', space=vmem, size = 0x2000, scoped, tag = 'input window, operand 0']
    #allocation3 [shape = 's32[2]{0}', space=sflag, size = 0x8, scoped, tag = 'scoped memory for tpu_custom_call.1']
    #allocation4 [shape = 's32[2]{0}', space=sflag, size = 0x8, scoped, tag = 'scoped memory for tpu_custom_call.1']
    #allocation5 [shape = 'u8[32768]{0}', space=vmem, size = 0x8000, scoped, tag = 'input window, operand 1, single buffered']
    #allocation6 [shape = 's32[1]{0}', space=sflag, size = 0x4, scoped, tag = 'scoped memory for tpu_custom_call.1']
    #allocation7 [shape = 'u8[8192]{0}', space=vmem, size = 0x2000, scoped, tag = 'output window, operand 0']
    %8 = vsyncpa [#allocation3], 0
    %s9 = scalar_lea.sflag [#allocation3], 1
    %10 = vsyncpa %s9, 0
    %11 = vsyncpa [#allocation6], 0
    %12 = vsyncpa [#allocation4], 0
    %s13 = scalar_lea.sflag [#allocation4], 1
    %14 = vsyncpa %s13, 0
    loop: start=0, step=1, limit=4
    $region2: #{tpu_custom_call.1} parent=1 // loop_pre_header
      _
    $region3: #{tpu_custom_call.1} parent=1 // loop_header
      %s16 = sphi 0, %s20
      %p17 = scmp.ge.s32.totalorder %s16, 4
      %s26 = sphi 0, %s28
      %s29 = sphi 0, %s26
      %s30 = sphi 0, %s29
      %s46 = sphi 0, %s30
      %s50 = sphi 0, %s50
      %s52 = sphi 0, %s50
      %s53 = sphi 0, %s52
      %s67 = sphi 0, %s53
      %s71 = sphi 0, %s71
      %s73 = sphi 0, %s71
      %s74 = sphi 0, %s73
      %s88 = sphi 0, %s74
      %s94 = sphi 0, %s96
      %s97 = sphi 0, %s94
      %s98 = sphi 0, %s97
      %s114 = sphi 0, %s98
    $region4: #{tpu_custom_call.1} parent=1 // loop_header_branch
      %19 = sbr.rel (%p17) target = $region8
    $region5: #{tpu_custom_call.1} parent=1 // loop_body
      %s21 = ssub.s32 %s16, 1
      %s22 = ssub.s32 %s16, 2
      %s23 = sadd.s32 %s16, 1
      %s24 = ssub.s32 %s16, %s23
      %p25 = scmp.eq.s32.totalorder %s24, 0
      %s27 = sadd.s32 %s26, 1
      %s28 = scalar_select %p25, %s26, %s27
      %p31 = pneg %p25
      %p32 = scmp.eq.s32.totalorder %s16, 1
      %p33 = por %p31, %p32
      %p34 = scmp.ne.s32.totalorder %s26, %s29
      %p35 = scmp.eq.s32.totalorder %s16, 0
      %p36 = por %p34, %p35
      %p37 = scmp.ne.s32.totalorder %s26, %s29
      %p38 = scmp.eq.s32.totalorder %s21, 1
      %p39 = por %p37, %p38
      %p40 = scmp.ne.s32.totalorder %s29, %s30
      %p41 = scmp.eq.s32.totalorder %s21, 0
      %p42 = por %p40, %p41
      %p43 = scmp.ne.s32.totalorder %s29, %s30
      %p44 = scmp.eq.s32.totalorder %s22, 1
      %p45 = por %p43, %p44
      %p47 = scmp.ne.s32.totalorder %s30, %s46
      %p48 = scmp.eq.s32.totalorder %s22, 0
      %p49 = por %p47, %p48
      %s51 = sadd.s32 %s50, 1
      %p54 = scmp.eq.s32.totalorder %s16, 1
      %p55 = scmp.ne.s32.totalorder %s50, %s52
      %p56 = scmp.eq.s32.totalorder %s16, 0
      %p57 = por %p55, %p56
      %p58 = scmp.ne.s32.totalorder %s50, %s52
      %p59 = scmp.eq.s32.totalorder %s21, 1
      %p60 = por %p58, %p59
      %p61 = scmp.ne.s32.totalorder %s52, %s53
      %p62 = scmp.eq.s32.totalorder %s21, 0
      %p63 = por %p61, %p62
      %p64 = scmp.ne.s32.totalorder %s52, %s53
      %p65 = scmp.eq.s32.totalorder %s22, 1
      %p66 = por %p64, %p65
      %p68 = scmp.ne.s32.totalorder %s53, %s67
      %p69 = scmp.eq.s32.totalorder %s22, 0
      %p70 = por %p68, %p69
      %s72 = sadd.s32 %s71, 1
      %p75 = scmp.eq.s32.totalorder %s16, 1
      %p76 = scmp.ne.s32.totalorder %s71, %s73
      %p77 = scmp.eq.s32.totalorder %s16, 0
      %p78 = por %p76, %p77
      %p79 = scmp.ne.s32.totalorder %s71, %s73
      %p80 = scmp.eq.s32.totalorder %s21, 1
      %p81 = por %p79, %p80
      %p82 = scmp.ne.s32.totalorder %s73, %s74
      %p83 = scmp.eq.s32.totalorder %s21, 0
      %p84 = por %p82, %p83
      %p85 = scmp.ne.s32.totalorder %s73, %s74
      %p86 = scmp.eq.s32.totalorder %s22, 1
      %p87 = por %p85, %p86
      %p89 = scmp.ne.s32.totalorder %s74, %s88
      %p90 = scmp.eq.s32.totalorder %s22, 0
      %p91 = por %p89, %p90
      %s92 = ssub.s32 %s16, %s23
      %p93 = scmp.eq.s32.totalorder %s92, 0
      %s95 = sadd.s32 %s94, 1
      %s96 = scalar_select %p93, %s94, %s95
      %p99 = pneg %p93
      %p100 = scmp.eq.s32.totalorder %s16, 1
      %p101 = por %p99, %p100
      %p102 = scmp.ne.s32.totalorder %s94, %s97
      %p103 = scmp.eq.s32.totalorder %s16, 0
      %p104 = por %p102, %p103
      %p105 = scmp.ne.s32.totalorder %s94, %s97
      %p106 = scmp.eq.s32.totalorder %s21, 1
      %p107 = por %p105, %p106
      %p108 = scmp.ne.s32.totalorder %s97, %s98
      %p109 = scmp.eq.s32.totalorder %s21, 0
      %p110 = por %p108, %p109
      %p111 = scmp.ne.s32.totalorder %s97, %s98
      %p112 = scmp.eq.s32.totalorder %s22, 1
      %p113 = por %p111, %p112
      %p115 = scmp.ne.s32.totalorder %s98, %s114
      %p116 = scmp.eq.s32.totalorder %s22, 0
      %p117 = por %p115, %p116
      %p118 = scmp.le.s32.totalorder 1, %s16
      %p119 = scmp.lt.s32.totalorder %s16, 3
      %p120 = pnand %p118, %p119
      %p121 = pneg %p120
      // Predicated region
      $region9: #{tpu_custom_call.1} parent=5 // pred_check
        _
      $region10: #{tpu_custom_call.1} parent=5 // pred_check_branch
        %123 = sbr.rel (%p120) target = $region12
      $region11: #{tpu_custom_call.1} parent=5 // pred_region
        %s124 = ssub.s32 %s16, 1
        // Predicated region
        $region13: #{tpu_custom_call.1} parent=11 // pred_check
          %p125 = pneg %p63
        $region14: #{tpu_custom_call.1} parent=11 // pred_check_branch
          %127 = sbr.rel (%p125) target = $region16
        $region15: #{tpu_custom_call.1} parent=11 // pred_region
          %s129 = ssub.s32 1024, 1024
          %130 = vsyncadd [#allocation6], %s129
          %s131 = sshll.u32 [#allocation5], 4
          %s132 = int_to_ptr.vmem [resolvable:$true] %s131
          %137 = dma.hbm_to_vmem [thread:$0]  %s1, 1024, %s132, [#allocation6], 256, 256, 16
        $region16: #{tpu_custom_call.1} parent=11 // pred_fallthru
          _
        // Predicated region
        $region17: #{tpu_custom_call.1} parent=11 // pred_check
          %p138 = pneg %p84
        $region18: #{tpu_custom_call.1} parent=11 // pred_check_branch
          %140 = sbr.rel (%p138) target = $region20
        $region19: #{tpu_custom_call.1} parent=11 // pred_region
          _
        $region20: #{tpu_custom_call.1} parent=11 // pred_fallthru
          _
      $region12: #{tpu_custom_call.1} parent=5 // pred_fallthru
        _
      %p141 = scmp.lt.s32.totalorder %s16, 2
      // Predicated region
      $region21: #{tpu_custom_call.1} parent=5 // pred_check
        %p142 = pneg %p141
      $region22: #{tpu_custom_call.1} parent=5 // pred_check_branch
        %144 = sbr.rel (%p142) target = $region24
      $region23: #{tpu_custom_call.1} parent=5 // pred_region
        // Predicated region
        $region25: #{tpu_custom_call.1} parent=23 // pred_check
          %p145 = pneg %p36
        $region26: #{tpu_custom_call.1} parent=23 // pred_check_branch
          %147 = sbr.rel (%p145) target = $region28
        $region27: #{tpu_custom_call.1} parent=23 // pred_region
          %s148 = sand.u32 %s26, 1
          %s149 = scalar_lea.sflag [#allocation3], %s148
          %s150 = sand.u32 %s26, 1
          %s151 = smul.addr %s150, 8
          %s152 = scalar_lea.vmem [#allocation2], %s151
          %s154 = ssub.s32 128, 128
          %155 = vsyncadd %s149, %s154
          %s156 = smul.addr %s16, 128
          %s157 = scalar_lea.hbm %s0, %s156
          %s159 = sshll.u32 %s152, 4
          %s160 = int_to_ptr.vmem [resolvable:$true] %s159
          %162 = dma.hbm_to_vmem [thread:$0]  %s157, 128, %s160, %s149
        $region28: #{tpu_custom_call.1} parent=23 // pred_fallthru
          _
      $region24: #{tpu_custom_call.1} parent=5 // pred_fallthru
        _
      %p163 = scmp.le.s32.totalorder 1, %s16
      %p164 = scmp.lt.s32.totalorder %s16, 3
      %p165 = pnand %p163, %p164
      %p166 = pneg %p165
      // Predicated region
      $region29: #{tpu_custom_call.1} parent=5 // pred_check
        _
      $region30: #{tpu_custom_call.1} parent=5 // pred_check_branch
        %168 = sbr.rel (%p165) target = $region32
      $region31: #{tpu_custom_call.1} parent=5 // pred_region
        %s169 = ssub.s32 %s16, 1
        %s170 = sand.u32 %s29, 1
        %s171 = scalar_lea.sflag [#allocation3], %s170
        %s172 = sand.u32 %s29, 1
        %s173 = smul.addr %s172, 8
        %s174 = scalar_lea.vmem [#allocation2], %s173
        // Predicated region
        $region33: #{tpu_custom_call.1} parent=31 // pred_check
          %p175 = pneg %p42
        $region34: #{tpu_custom_call.1} parent=31 // pred_check_branch
          %177 = sbr.rel (%p175) target = $region36
        $region35: #{tpu_custom_call.1} parent=31 // pred_region
          %178 = dma.done %s171, 128
        $region36: #{tpu_custom_call.1} parent=31 // pred_fallthru
          _
        // Predicated region
        $region37: #{tpu_custom_call.1} parent=31 // pred_check
          %p179 = pneg %p63
        $region38: #{tpu_custom_call.1} parent=31 // pred_check_branch
          %181 = sbr.rel (%p179) target = $region40
        $region39: #{tpu_custom_call.1} parent=31 // pred_region
          %182 = dma.done [#allocation6], 1024
        $region40: #{tpu_custom_call.1} parent=31 // pred_fallthru
          _
        %s183 = sand.u32 %s29, 1
        %s184 = scalar_lea.sflag [#allocation3], %s183
        %s185 = sand.u32 %s29, 1
        %s186 = smul.addr %s185, 8
        %s187 = scalar_lea.vmem [#allocation2], %s186
        %p188 = pneg %p42
        %p189 = pneg %p39
        %p190 = pneg %p63
        %p191 = pneg %p60
        %p192 = pneg %p84
        %p193 = pneg %p81
        %p194 = pneg %p110
        %p195 = pneg %p107
        %s196 = sand.u32 %s97, 1
        %s197 = scalar_lea.sflag [#allocation4], %s196
        %s198 = sand.u32 %s97, 1
        %s199 = smul.addr %s198, 8
        %s200 = scalar_lea.vmem [#allocation7], %s199
        %v201 = vld [vmem:[%s174] sm:$0xff]
        %v202 = vld [vmem:[#allocation5] sm:$0xff]
        %v203 = vld [vmem:[#allocation5 + $0x8] sm:$0xff]
        %v204 = vld [vmem:[#allocation5 + $0x10] sm:$0xff]
        %v205 = vld [vmem:[#allocation5 + $0x18] sm:$0xff]
        %v206 = vld [vmem:[#allocation5 + $0x20] sm:$0xff]
        %v207 = vld [vmem:[#allocation5 + $0x28] sm:$0xff]
        %v208 = vld [vmem:[#allocation5 + $0x30] sm:$0xff]
        %v209 = vld [vmem:[#allocation5 + $0x38] sm:$0xff]
        %v210 = vld [vmem:[%s2] sm:$0x3]
        %v212 = vlaneseq
        %v213 = vshrl.u32 %v212, 7
        %v214 = vsub.s32 0, %v213
        %v215 = vrot.slane %v210, %v214
        %v216 = vlaneseq
        %v217 = vshrl.u32 %v216, 7
        %v218 = vsub.s32 1, %v217
        %v219 = vrot.slane %v210, %v218
        %vm222 = vcmask 261120
        %v224 = vsel %vm222, %v201, 0
        %226 = vmatprep.subr.mxu0 0.0
        %227 = vmatpush1.msra.mxu0 0.0
        %228 = vmatprep.subr.mxu0 0.0
        %229 = vmatpush1.msra.mxu0 0.0
        %230 = vmatprep.subr.mxu0 0.0
        %231 = vmatpush1.msra.mxu0 0.0
        %232 = vmatprep.subr.mxu0 0.0
        %233 = vmatpush1.msra.mxu0 0.0
        %234 = vmatprep.subr.mxu0 0.0
        %235 = vmatpush1.msra.mxu0 0.0
        %236 = vmatprep.subr.mxu0 0.0
        %237 = vmatpush1.msra.mxu0 0.0
        %238 = vmatprep.subr.mxu0 0.0
        %239 = vmatpush1.msra.mxu0 0.0
        %240 = vmatprep.subr.mxu0 0.0
        %241 = vmatpush1.msra.mxu0 0.0
        %242 = vmatprep.subr.mxu0 0.0
        %243 = vmatpush1.msra.mxu0 0.0
        %244 = vmatprep.subr.mxu0 0.0
        %245 = vmatpush1.msra.mxu0 0.0
        %246 = vmatprep.subr.mxu0 0.0
        %247 = vmatpush1.msra.mxu0 0.0
        %248 = vmatprep.subr.mxu0 0.0
        %249 = vmatpush1.msra.mxu0 0.0
        %250 = vmatprep.subr.mxu0 %v209
        %251 = vmatpush1.msra.mxu0 %v208
        %252 = vmatprep.subr.mxu0 %v207
        %253 = vmatpush1.msra.mxu0 %v206
        %254 = vmatprep.subr.mxu0 %v205
        %255 = vmatpush1.msra.mxu0 %v204
        %256 = vmatprep.subr.mxu0 %v203
        %257 = vmatpush1.msra.mxu0 %v202
        %258 = vmatprep.subr.mxu0 0.0
        %259 = vmatpush2.msra.mxu0 0.0
        %260 = vmatprep.subr.mxu0 0.0
        %261 = vmatpush2.msra.mxu0 0.0
        %262 = vmatprep.subr.mxu0 0.0
        %263 = vmatpush2.msra.mxu0 0.0
        %264 = vmatprep.subr.mxu0 0.0
        %265 = vmatpush2.msra.mxu0 0.0
        %266 = vmatprep.subr.mxu0 0.0
        %267 = vmatpush2.msra.mxu0 0.0
        %268 = vmatprep.subr.mxu0 0.0
        %269 = vmatpush2.msra.mxu0 0.0
        %270 = vmatprep.subr.mxu0 0.0
        %271 = vmatpush2.msra.mxu0 0.0
        %272 = vmatprep.subr.mxu0 0.0
        %273 = vmatpush2.msra.mxu0 0.0
        %274 = vmatprep.subr.mxu0 0.0
        %275 = vmatpush2.msra.mxu0 0.0
        %276 = vmatprep.subr.mxu0 0.0
        %277 = vmatpush2.msra.mxu0 0.0
        %278 = vmatprep.subr.mxu0 0.0
        %279 = vmatpush2.msra.mxu0 0.0
        %280 = vmatprep.subr.mxu0 0.0
        %281 = vmatpush2.msra.mxu0 0.0
        %282 = vmatprep.subr.mxu0 0.0
        %283 = vmatpush2.msra.mxu0 0.0
        %284 = vmatprep.subr.mxu0 0.0
        %285 = vmatpush2.msra.mxu0 0.0
        %286 = vmatprep.subr.mxu0 0.0
        %287 = vmatpush2.msra.mxu0 0.0
        %288 = vmatprep.subr.mxu0 0.0
        %289 = vmatpush2.msra.mxu0 0.0
        %290 = vmatprep.mubr.f32.mxu0 0.0
        %291 = vmatmul.mubr.f32.gmra.mxu0 %v224
        %v292 = vpop.f32.mrf.mxu0
        %v293 = vadd.f32 %v215, %v292
        %v294 = vpop.f32.mrf.mxu0
        %v295 = vadd.f32 %v219, %v294
        %296 = vdwg.mxu0
        %v297 = vmul.f32 %v293, 0.25
        %299 = vrot.lane.b32.xlu0 %v293, 64
        %v300 = vpop.permute.xlu0 %299
        %vm301 = vcmask 130048
        %v303 = vsel %vm301, %v297, 0
        %v305 = vsel %vm301, %v300, 0
        %307 = vmatprep.subr.mxu0 0.0
        %308 = vmatpush1.xpose.msra.mxu0 0.0
        %309 = vmatprep.subr.mxu0 0.0
        %310 = vmatpush1.xpose.msra.mxu0 0.0
        %311 = vmatprep.subr.mxu0 0.0
        %312 = vmatpush1.xpose.msra.mxu0 0.0
        %313 = vmatprep.subr.mxu0 0.0
        %314 = vmatpush1.xpose.msra.mxu0 0.0
        %315 = vmatprep.subr.mxu0 0.0
        %316 = vmatpush1.xpose.msra.mxu0 0.0
        %317 = vmatprep.subr.mxu0 0.0
        %318 = vmatpush1.xpose.msra.mxu0 0.0
        %319 = vmatprep.subr.mxu0 0.0
        %320 = vmatpush1.xpose.msra.mxu0 0.0
        %321 = vmatprep.subr.mxu0 0.0
        %322 = vmatpush1.xpose.msra.mxu0 0.0
        %323 = vmatprep.subr.mxu0 0.0
        %324 = vmatpush1.xpose.msra.mxu0 0.0
        %325 = vmatprep.subr.mxu0 0.0
        %326 = vmatpush1.xpose.msra.mxu0 0.0
        %327 = vmatprep.subr.mxu0 0.0
        %328 = vmatpush1.xpose.msra.mxu0 0.0
        %329 = vmatprep.subr.mxu0 0.0
        %330 = vmatpush1.xpose.msra.mxu0 0.0
        %331 = vmatprep.subr.mxu0 0.0
        %332 = vmatpush1.xpose.msra.mxu0 0.0
        %333 = vmatprep.subr.mxu0 0.0
        %334 = vmatpush1.xpose.msra.mxu0 0.0
        %335 = vmatprep.subr.mxu0 0.0
        %336 = vmatpush1.xpose.msra.mxu0 0.0
        %337 = vmatprep.subr.mxu0 0.0
        %338 = vmatpush1.xpose.msra.mxu0 %v305
        %339 = vmatprep.subr.mxu0 0.0
        %340 = vmatpush2.xpose.msra.mxu0 0.0
        %341 = vmatprep.subr.mxu0 0.0
        %342 = vmatpush2.xpose.msra.mxu0 0.0
        %343 = vmatprep.subr.mxu0 0.0
        %344 = vmatpush2.xpose.msra.mxu0 0.0
        %345 = vmatprep.subr.mxu0 0.0
        %346 = vmatpush2.xpose.msra.mxu0 0.0
        %347 = vmatprep.subr.mxu0 0.0
        %348 = vmatpush2.xpose.msra.mxu0 0.0
        %349 = vmatprep.subr.mxu0 0.0
        %350 = vmatpush2.xpose.msra.mxu0 0.0
        %351 = vmatprep.subr.mxu0 0.0
        %352 = vmatpush2.xpose.msra.mxu0 0.0
        %353 = vmatprep.subr.mxu0 0.0
        %354 = vmatpush2.xpose.msra.mxu0 0.0
        %355 = vmatprep.subr.mxu0 0.0
        %356 = vmatpush2.xpose.msra.mxu0 0.0
        %357 = vmatprep.subr.mxu0 0.0
        %358 = vmatpush2.xpose.msra.mxu0 0.0
        %359 = vmatprep.subr.mxu0 0.0
        %360 = vmatpush2.xpose.msra.mxu0 0.0
        %361 = vmatprep.subr.mxu0 0.0
        %362 = vmatpush2.xpose.msra.mxu0 0.0
        %363 = vmatprep.subr.mxu0 0.0
        %364 = vmatpush2.xpose.msra.mxu0 0.0
        %365 = vmatprep.subr.mxu0 0.0
        %366 = vmatpush2.xpose.msra.mxu0 0.0
        %367 = vmatprep.subr.mxu0 0.0
        %368 = vmatpush2.xpose.msra.mxu0 0.0
        %369 = vmatprep.subr.mxu0 0.0
        %370 = vmatpush2.xpose.msra.mxu0 0.0
        %371 = vmatprep.mubr.f32.mxu0 0.0
        %372 = vmatmul.mubr.f32.gmra.mxu0 %v303
        %v373 = vpop.f32.mrf.mxu0
        %v374 = vadd.f32 0.0, %v373
        %v375 = vpop.f32.mrf.mxu0
        %376 = vdwg.mxu0
        %vm377 = vcmask 64512
        %v378 = vsel %vm377, %v374, -inf
        %379 = vmax.xlane.f32.xlu0 %v378
        %v380 = vpop.xlane.xlu0 %379
        %v381 = vsub.f32 %v374, %v380
        %v382 = vmul.f32 %v381, 1.442695
        %v383 = vpow.pop %v382
        %v384 = vsel %vm377, %v383, 0.0
        %385 = vadd.xlane.f32.xlu0 %v384
        %v386 = vpop.xlane.xlu0 %385
        %v387 = vrcp.pop %v386
        %v388 = vmul.f32 %v383, %v387
        %v390 = vsel %vm377, %v388, 0
        %392 = vmatprep.subr.mxu0 0.0
        %393 = vmatpush1.msra.mxu0 0.0
        %394 = vmatprep.subr.mxu0 0.0
        %395 = vmatpush1.msra.mxu0 0.0
        %396 = vmatprep.subr.mxu0 0.0
        %397 = vmatpush1.msra.mxu0 0.0
        %398 = vmatprep.subr.mxu0 0.0
        %399 = vmatpush1.msra.mxu0 0.0
        %400 = vmatprep.subr.mxu0 0.0
        %401 = vmatpush1.msra.mxu0 0.0
        %402 = vmatprep.subr.mxu0 0.0
        %403 = vmatpush1.msra.mxu0 0.0
        %404 = vmatprep.subr.mxu0 0.0
        %405 = vmatpush1.msra.mxu0 0.0
        %406 = vmatprep.subr.mxu0 0.0
        %407 = vmatpush1.msra.mxu0 0.0
        %408 = vmatprep.subr.mxu0 0.0
        %409 = vmatpush1.msra.mxu0 0.0
        %410 = vmatprep.subr.mxu0 0.0
        %411 = vmatpush1.msra.mxu0 0.0
        %412 = vmatprep.subr.mxu0 0.0
        %413 = vmatpush1.msra.mxu0 0.0
        %414 = vmatprep.subr.mxu0 0.0
        %415 = vmatpush1.msra.mxu0 0.0
        %416 = vmatprep.subr.mxu0 0.0
        %417 = vmatpush1.msra.mxu0 0.0
        %418 = vmatprep.subr.mxu0 0.0
        %419 = vmatpush1.msra.mxu0 0.0
        %420 = vmatprep.subr.mxu0 0.0
        %421 = vmatpush1.msra.mxu0 0.0
        %422 = vmatprep.subr.mxu0 0.0
        %423 = vmatpush1.msra.mxu0 %v295
        %424 = vmatprep.subr.mxu0 0.0
        %425 = vmatpush2.msra.mxu0 0.0
        %426 = vmatprep.subr.mxu0 0.0
        %427 = vmatpush2.msra.mxu0 0.0
        %428 = vmatprep.subr.mxu0 0.0
        %429 = vmatpush2.msra.mxu0 0.0
        %430 = vmatprep.subr.mxu0 0.0
        %431 = vmatpush2.msra.mxu0 0.0
        %432 = vmatprep.subr.mxu0 0.0
        %433 = vmatpush2.msra.mxu0 0.0
        %434 = vmatprep.subr.mxu0 0.0
        %435 = vmatpush2.msra.mxu0 0.0
        %436 = vmatprep.subr.mxu0 0.0
        %437 = vmatpush2.msra.mxu0 0.0
        %438 = vmatprep.subr.mxu0 0.0
        %439 = vmatpush2.msra.mxu0 0.0
        %440 = vmatprep.subr.mxu0 0.0
        %441 = vmatpush2.msra.mxu0 0.0
        %442 = vmatprep.subr.mxu0 0.0
        %443 = vmatpush2.msra.mxu0 0.0
        %444 = vmatprep.subr.mxu0 0.0
        %445 = vmatpush2.msra.mxu0 0.0
        %446 = vmatprep.subr.mxu0 0.0
        %447 = vmatpush2.msra.mxu0 0.0
        %448 = vmatprep.subr.mxu0 0.0
        %449 = vmatpush2.msra.mxu0 0.0
        %450 = vmatprep.subr.mxu0 0.0
        %451 = vmatpush2.msra.mxu0 0.0
        %452 = vmatprep.subr.mxu0 0.0
        %453 = vmatpush2.msra.mxu0 0.0
        %454 = vmatprep.subr.mxu0 0.0
        %455 = vmatpush2.msra.mxu0 0.0
        %456 = vmatprep.mubr.f32.mxu0 0.0
        %457 = vmatmul.mubr.f32.gmra.mxu0 %v390
        %v458 = vpop.f32.mrf.mxu0
        %v459 = vadd.f32 0.0, %v458
        %v460 = vpop.f32.mrf.mxu0
        %461 = vdwg.mxu0
        %462 = vrot.lane.b32.xlu0 %v297, 112
        %v463 = vpop.permute.xlu0 %462
        %464 = vrot.lane.b32.xlu0 %v293, 48
        %v465 = vpop.permute.xlu0 %464
        %v466 = vsel %vm301, %v463, 0
        %v468 = vsel %vm301, %v465, 0
        %470 = vmatprep.subr.mxu0 0.0
        %471 = vmatpush1.xpose.msra.mxu0 0.0
        %472 = vmatprep.subr.mxu0 0.0
        %473 = vmatpush1.xpose.msra.mxu0 0.0
        %474 = vmatprep.subr.mxu0 0.0
        %475 = vmatpush1.xpose.msra.mxu0 0.0
        %476 = vmatprep.subr.mxu0 0.0
        %477 = vmatpush1.xpose.msra.mxu0 0.0
        %478 = vmatprep.subr.mxu0 0.0
        %479 = vmatpush1.xpose.msra.mxu0 0.0
        %480 = vmatprep.subr.mxu0 0.0
        %481 = vmatpush1.xpose.msra.mxu0 0.0
        %482 = vmatprep.subr.mxu0 0.0
        %483 = vmatpush1.xpose.msra.mxu0 0.0
        %484 = vmatprep.subr.mxu0 0.0
        %485 = vmatpush1.xpose.msra.mxu0 0.0
        %486 = vmatprep.subr.mxu0 0.0
        %487 = vmatpush1.xpose.msra.mxu0 0.0
        %488 = vmatprep.subr.mxu0 0.0
        %489 = vmatpush1.xpose.msra.mxu0 0.0
        %490 = vmatprep.subr.mxu0 0.0
        %491 = vmatpush1.xpose.msra.mxu0 0.0
        %492 = vmatprep.subr.mxu0 0.0
        %493 = vmatpush1.xpose.msra.mxu0 0.0
        %494 = vmatprep.subr.mxu0 0.0
        %495 = vmatpush1.xpose.msra.mxu0 0.0
        %496 = vmatprep.subr.mxu0 0.0
        %497 = vmatpush1.xpose.msra.mxu0 0.0
        %498 = vmatprep.subr.mxu0 0.0
        %499 = vmatpush1.xpose.msra.mxu0 0.0
        %500 = vmatprep.subr.mxu0 0.0
        %501 = vmatpush1.xpose.msra.mxu0 %v468
        %502 = vmatprep.subr.mxu0 0.0
        %503 = vmatpush2.xpose.msra.mxu0 0.0
        %504 = vmatprep.subr.mxu0 0.0
        %505 = vmatpush2.xpose.msra.mxu0 0.0
        %506 = vmatprep.subr.mxu0 0.0
        %507 = vmatpush2.xpose.msra.mxu0 0.0
        %508 = vmatprep.subr.mxu0 0.0
        %509 = vmatpush2.xpose.msra.mxu0 0.0
        %510 = vmatprep.subr.mxu0 0.0
        %511 = vmatpush2.xpose.msra.mxu0 0.0
        %512 = vmatprep.subr.mxu0 0.0
        %513 = vmatpush2.xpose.msra.mxu0 0.0
        %514 = vmatprep.subr.mxu0 0.0
        %515 = vmatpush2.xpose.msra.mxu0 0.0
        %516 = vmatprep.subr.mxu0 0.0
        %517 = vmatpush2.xpose.msra.mxu0 0.0
        %518 = vmatprep.subr.mxu0 0.0
        %519 = vmatpush2.xpose.msra.mxu0 0.0
        %520 = vmatprep.subr.mxu0 0.0
        %521 = vmatpush2.xpose.msra.mxu0 0.0
        %522 = vmatprep.subr.mxu0 0.0
        %523 = vmatpush2.xpose.msra.mxu0 0.0
        %524 = vmatprep.subr.mxu0 0.0
        %525 = vmatpush2.xpose.msra.mxu0 0.0
        %526 = vmatprep.subr.mxu0 0.0
        %527 = vmatpush2.xpose.msra.mxu0 0.0
        %528 = vmatprep.subr.mxu0 0.0
        %529 = vmatpush2.xpose.msra.mxu0 0.0
        %530 = vmatprep.subr.mxu0 0.0
        %531 = vmatpush2.xpose.msra.mxu0 0.0
        %532 = vmatprep.subr.mxu0 0.0
        %533 = vmatpush2.xpose.msra.mxu0 0.0
        %534 = vmatprep.mubr.f32.mxu0 0.0
        %535 = vmatmul.mubr.f32.gmra.mxu0 %v466
        %v536 = vpop.f32.mrf.mxu0
        %v537 = vadd.f32 0.0, %v536
        %v538 = vpop.f32.mrf.mxu0
        %539 = vdwg.mxu0
        %v540 = vsel %vm377, %v537, -inf
        %541 = vmax.xlane.f32.xlu0 %v540
        %v542 = vpop.xlane.xlu0 %541
        %v543 = vsub.f32 %v537, %v542
        %v544 = vmul.f32 %v543, 1.442695
        %v545 = vpow.pop %v544
        %v546 = vsel %vm377, %v545, 0.0
        %547 = vadd.xlane.f32.xlu0 %v546
        %v548 = vpop.xlane.xlu0 %547
        %v549 = vrcp.pop %v548
        %v550 = vmul.f32 %v545, %v549
        %552 = vrot.lane.b32.xlu0 %v295, 112
        %v553 = vpop.permute.xlu0 %552
        %v556 = vsel %vm377, %v550, 0
        %558 = vmatprep.subr.mxu0 0.0
        %559 = vmatpush1.msra.mxu0 0.0
        %560 = vmatprep.subr.mxu0 0.0
        %561 = vmatpush1.msra.mxu0 0.0
        %562 = vmatprep.subr.mxu0 0.0
        %563 = vmatpush1.msra.mxu0 0.0
        %564 = vmatprep.subr.mxu0 0.0
        %565 = vmatpush1.msra.mxu0 0.0
        %566 = vmatprep.subr.mxu0 0.0
        %567 = vmatpush1.msra.mxu0 0.0
        %568 = vmatprep.subr.mxu0 0.0
        %569 = vmatpush1.msra.mxu0 0.0
        %570 = vmatprep.subr.mxu0 0.0
        %571 = vmatpush1.msra.mxu0 0.0
        %572 = vmatprep.subr.mxu0 0.0
        %573 = vmatpush1.msra.mxu0 0.0
        %574 = vmatprep.subr.mxu0 0.0
        %575 = vmatpush1.msra.mxu0 0.0
        %576 = vmatprep.subr.mxu0 0.0
        %577 = vmatpush1.msra.mxu0 0.0
        %578 = vmatprep.subr.mxu0 0.0
        %579 = vmatpush1.msra.mxu0 0.0
        %580 = vmatprep.subr.mxu0 0.0
        %581 = vmatpush1.msra.mxu0 0.0
        %582 = vmatprep.subr.mxu0 0.0
        %583 = vmatpush1.msra.mxu0 0.0
        %584 = vmatprep.subr.mxu0 0.0
        %585 = vmatpush1.msra.mxu0 0.0
        %586 = vmatprep.subr.mxu0 0.0
        %587 = vmatpush1.msra.mxu0 0.0
        %588 = vmatprep.subr.mxu0 0.0
        %589 = vmatpush1.msra.mxu0 %v553
        %590 = vmatprep.subr.mxu0 0.0
        %591 = vmatpush2.msra.mxu0 0.0
        %592 = vmatprep.subr.mxu0 0.0
        %593 = vmatpush2.msra.mxu0 0.0
        %594 = vmatprep.subr.mxu0 0.0
        %595 = vmatpush2.msra.mxu0 0.0
        %596 = vmatprep.subr.mxu0 0.0
        %597 = vmatpush2.msra.mxu0 0.0
        %598 = vmatprep.subr.mxu0 0.0
        %599 = vmatpush2.msra.mxu0 0.0
        %600 = vmatprep.subr.mxu0 0.0
        %601 = vmatpush2.msra.mxu0 0.0
        %602 = vmatprep.subr.mxu0 0.0
        %603 = vmatpush2.msra.mxu0 0.0
        %604 = vmatprep.subr.mxu0 0.0
        %605 = vmatpush2.msra.mxu0 0.0
        %606 = vmatprep.subr.mxu0 0.0
        %607 = vmatpush2.msra.mxu0 0.0
        %608 = vmatprep.subr.mxu0 0.0
        %609 = vmatpush2.msra.mxu0 0.0
        %610 = vmatprep.subr.mxu0 0.0
        %611 = vmatpush2.msra.mxu0 0.0
        %612 = vmatprep.subr.mxu0 0.0
        %613 = vmatpush2.msra.mxu0 0.0
        %614 = vmatprep.subr.mxu0 0.0
        %615 = vmatpush2.msra.mxu0 0.0
        %616 = vmatprep.subr.mxu0 0.0
        %617 = vmatpush2.msra.mxu0 0.0
        %618 = vmatprep.subr.mxu0 0.0
        %619 = vmatpush2.msra.mxu0 0.0
        %620 = vmatprep.subr.mxu0 0.0
        %621 = vmatpush2.msra.mxu0 0.0
        %622 = vmatprep.mubr.f32.mxu0 0.0
        %623 = vmatmul.mubr.f32.gmra.mxu0 %v556
        %v624 = vpop.f32.mrf.mxu0
        %v625 = vadd.f32 0.0, %v624
        %v626 = vpop.f32.mrf.mxu0
        %627 = vdwg.mxu0
        %628 = vrot.lane.b32.xlu0 %v297, 96
        %v629 = vpop.permute.xlu0 %628
        %630 = vrot.lane.b32.xlu0 %v293, 32
        %v631 = vpop.permute.xlu0 %630
        %v632 = vsel %vm301, %v629, 0
        %v634 = vsel %vm301, %v631, 0
        %636 = vmatprep.subr.mxu0 0.0
        %637 = vmatpush1.xpose.msra.mxu0 0.0
        %638 = vmatprep.subr.mxu0 0.0
        %639 = vmatpush1.xpose.msra.mxu0 0.0
        %640 = vmatprep.subr.mxu0 0.0
        %641 = vmatpush1.xpose.msra.mxu0 0.0
        %642 = vmatprep.subr.mxu0 0.0
        %643 = vmatpush1.xpose.msra.mxu0 0.0
        %644 = vmatprep.subr.mxu0 0.0
        %645 = vmatpush1.xpose.msra.mxu0 0.0
        %646 = vmatprep.subr.mxu0 0.0
        %647 = vmatpush1.xpose.msra.mxu0 0.0
        %648 = vmatprep.subr.mxu0 0.0
        %649 = vmatpush1.xpose.msra.mxu0 0.0
        %650 = vmatprep.subr.mxu0 0.0
        %651 = vmatpush1.xpose.msra.mxu0 0.0
        %652 = vmatprep.subr.mxu0 0.0
        %653 = vmatpush1.xpose.msra.mxu0 0.0
        %654 = vmatprep.subr.mxu0 0.0
        %655 = vmatpush1.xpose.msra.mxu0 0.0
        %656 = vmatprep.subr.mxu0 0.0
        %657 = vmatpush1.xpose.msra.mxu0 0.0
        %658 = vmatprep.subr.mxu0 0.0
        %659 = vmatpush1.xpose.msra.mxu0 0.0
        %660 = vmatprep.subr.mxu0 0.0
        %661 = vmatpush1.xpose.msra.mxu0 0.0
        %662 = vmatprep.subr.mxu0 0.0
        %663 = vmatpush1.xpose.msra.mxu0 0.0
        %664 = vmatprep.subr.mxu0 0.0
        %665 = vmatpush1.xpose.msra.mxu0 0.0
        %666 = vmatprep.subr.mxu0 0.0
        %667 = vmatpush1.xpose.msra.mxu0 %v634
        %668 = vmatprep.subr.mxu0 0.0
        %669 = vmatpush2.xpose.msra.mxu0 0.0
        %670 = vmatprep.subr.mxu0 0.0
        %671 = vmatpush2.xpose.msra.mxu0 0.0
        %672 = vmatprep.subr.mxu0 0.0
        %673 = vmatpush2.xpose.msra.mxu0 0.0
        %674 = vmatprep.subr.mxu0 0.0
        %675 = vmatpush2.xpose.msra.mxu0 0.0
        %676 = vmatprep.subr.mxu0 0.0
        %677 = vmatpush2.xpose.msra.mxu0 0.0
        %678 = vmatprep.subr.mxu0 0.0
        %679 = vmatpush2.xpose.msra.mxu0 0.0
        %680 = vmatprep.subr.mxu0 0.0
        %681 = vmatpush2.xpose.msra.mxu0 0.0
        %682 = vmatprep.subr.mxu0 0.0
        %683 = vmatpush2.xpose.msra.mxu0 0.0
        %684 = vmatprep.subr.mxu0 0.0
        %685 = vmatpush2.xpose.msra.mxu0 0.0
        %686 = vmatprep.subr.mxu0 0.0
        %687 = vmatpush2.xpose.msra.mxu0 0.0
        %688 = vmatprep.subr.mxu0 0.0
        %689 = vmatpush2.xpose.msra.mxu0 0.0
        %690 = vmatprep.subr.mxu0 0.0
        %691 = vmatpush2.xpose.msra.mxu0 0.0
        %692 = vmatprep.subr.mxu0 0.0
        %693 = vmatpush2.xpose.msra.mxu0 0.0
        %694 = vmatprep.subr.mxu0 0.0
        %695 = vmatpush2.xpose.msra.mxu0 0.0
        %696 = vmatprep.subr.mxu0 0.0
        %697 = vmatpush2.xpose.msra.mxu0 0.0
        %698 = vmatprep.subr.mxu0 0.0
        %699 = vmatpush2.xpose.msra.mxu0 0.0
        %700 = vmatprep.mubr.f32.mxu0 0.0
        %701 = vmatmul.mubr.f32.gmra.mxu0 %v632
        %v702 = vpop.f32.mrf.mxu0
        %v703 = vadd.f32 0.0, %v702
        %v704 = vpop.f32.mrf.mxu0
        %705 = vdwg.mxu0
        %v706 = vsel %vm377, %v703, -inf
        %707 = vmax.xlane.f32.xlu0 %v706
        %v708 = vpop.xlane.xlu0 %707
        %v709 = vsub.f32 %v703, %v708
        %v710 = vmul.f32 %v709, 1.442695
        %v711 = vpow.pop %v710
        %v712 = vsel %vm377, %v711, 0.0
        %713 = vadd.xlane.f32.xlu0 %v712
        %v714 = vpop.xlane.xlu0 %713
        %v715 = vrcp.pop %v714
        %v716 = vmul.f32 %v711, %v715
        %717 = vrot.lane.b32.xlu0 %v295, 96
        %v718 = vpop.permute.xlu0 %717
        %v721 = vsel %vm377, %v716, 0
        %723 = vmatprep.subr.mxu0 0.0
        %724 = vmatpush1.msra.mxu0 0.0
        %725 = vmatprep.subr.mxu0 0.0
        %726 = vmatpush1.msra.mxu0 0.0
        %727 = vmatprep.subr.mxu0 0.0
        %728 = vmatpush1.msra.mxu0 0.0
        %729 = vmatprep.subr.mxu0 0.0
        %730 = vmatpush1.msra.mxu0 0.0
        %731 = vmatprep.subr.mxu0 0.0
        %732 = vmatpush1.msra.mxu0 0.0
        %733 = vmatprep.subr.mxu0 0.0
        %734 = vmatpush1.msra.mxu0 0.0
        %735 = vmatprep.subr.mxu0 0.0
        %736 = vmatpush1.msra.mxu0 0.0
        %737 = vmatprep.subr.mxu0 0.0
        %738 = vmatpush1.msra.mxu0 0.0
        %739 = vmatprep.subr.mxu0 0.0
        %740 = vmatpush1.msra.mxu0 0.0
        %741 = vmatprep.subr.mxu0 0.0
        %742 = vmatpush1.msra.mxu0 0.0
        %743 = vmatprep.subr.mxu0 0.0
        %744 = vmatpush1.msra.mxu0 0.0
        %745 = vmatprep.subr.mxu0 0.0
        %746 = vmatpush1.msra.mxu0 0.0
        %747 = vmatprep.subr.mxu0 0.0
        %748 = vmatpush1.msra.mxu0 0.0
        %749 = vmatprep.subr.mxu0 0.0
        %750 = vmatpush1.msra.mxu0 0.0
        %751 = vmatprep.subr.mxu0 0.0
        %752 = vmatpush1.msra.mxu0 0.0
        %753 = vmatprep.subr.mxu0 0.0
        %754 = vmatpush1.msra.mxu0 %v718
        %755 = vmatprep.subr.mxu0 0.0
        %756 = vmatpush2.msra.mxu0 0.0
        %757 = vmatprep.subr.mxu0 0.0
        %758 = vmatpush2.msra.mxu0 0.0
        %759 = vmatprep.subr.mxu0 0.0
        %760 = vmatpush2.msra.mxu0 0.0
        %761 = vmatprep.subr.mxu0 0.0
        %762 = vmatpush2.msra.mxu0 0.0
        %763 = vmatprep.subr.mxu0 0.0
        %764 = vmatpush2.msra.mxu0 0.0
        %765 = vmatprep.subr.mxu0 0.0
        %766 = vmatpush2.msra.mxu0 0.0
        %767 = vmatprep.subr.mxu0 0.0
        %768 = vmatpush2.msra.mxu0 0.0
        %769 = vmatprep.subr.mxu0 0.0
        %770 = vmatpush2.msra.mxu0 0.0
        %771 = vmatprep.subr.mxu0 0.0
        %772 = vmatpush2.msra.mxu0 0.0
        %773 = vmatprep.subr.mxu0 0.0
        %774 = vmatpush2.msra.mxu0 0.0
        %775 = vmatprep.subr.mxu0 0.0
        %776 = vmatpush2.msra.mxu0 0.0
        %777 = vmatprep.subr.mxu0 0.0
        %778 = vmatpush2.msra.mxu0 0.0
        %779 = vmatprep.subr.mxu0 0.0
        %780 = vmatpush2.msra.mxu0 0.0
        %781 = vmatprep.subr.mxu0 0.0
        %782 = vmatpush2.msra.mxu0 0.0
        %783 = vmatprep.subr.mxu0 0.0
        %784 = vmatpush2.msra.mxu0 0.0
        %785 = vmatprep.subr.mxu0 0.0
        %786 = vmatpush2.msra.mxu0 0.0
        %787 = vmatprep.mubr.f32.mxu0 0.0
        %788 = vmatmul.mubr.f32.gmra.mxu0 %v721
        %v789 = vpop.f32.mrf.mxu0
        %v790 = vadd.f32 0.0, %v789
        %v791 = vpop.f32.mrf.mxu0
        %792 = vdwg.mxu0
        %793 = vrot.lane.b32.xlu0 %v297, 80
        %v794 = vpop.permute.xlu0 %793
        %795 = vrot.lane.b32.xlu0 %v293, 16
        %v796 = vpop.permute.xlu0 %795
        %v797 = vsel %vm301, %v794, 0
        %v799 = vsel %vm301, %v796, 0
        %801 = vmatprep.subr.mxu0 0.0
        %802 = vmatpush1.xpose.msra.mxu0 0.0
        %803 = vmatprep.subr.mxu0 0.0
        %804 = vmatpush1.xpose.msra.mxu0 0.0
        %805 = vmatprep.subr.mxu0 0.0
        %806 = vmatpush1.xpose.msra.mxu0 0.0
        %807 = vmatprep.subr.mxu0 0.0
        %808 = vmatpush1.xpose.msra.mxu0 0.0
        %809 = vmatprep.subr.mxu0 0.0
        %810 = vmatpush1.xpose.msra.mxu0 0.0
        %811 = vmatprep.subr.mxu0 0.0
        %812 = vmatpush1.xpose.msra.mxu0 0.0
        %813 = vmatprep.subr.mxu0 0.0
        %814 = vmatpush1.xpose.msra.mxu0 0.0
        %815 = vmatprep.subr.mxu0 0.0
        %816 = vmatpush1.xpose.msra.mxu0 0.0
        %817 = vmatprep.subr.mxu0 0.0
        %818 = vmatpush1.xpose.msra.mxu0 0.0
        %819 = vmatprep.subr.mxu0 0.0
        %820 = vmatpush1.xpose.msra.mxu0 0.0
        %821 = vmatprep.subr.mxu0 0.0
        %822 = vmatpush1.xpose.msra.mxu0 0.0
        %823 = vmatprep.subr.mxu0 0.0
        %824 = vmatpush1.xpose.msra.mxu0 0.0
        %825 = vmatprep.subr.mxu0 0.0
        %826 = vmatpush1.xpose.msra.mxu0 0.0
        %827 = vmatprep.subr.mxu0 0.0
        %828 = vmatpush1.xpose.msra.mxu0 0.0
        %829 = vmatprep.subr.mxu0 0.0
        %830 = vmatpush1.xpose.msra.mxu0 0.0
        %831 = vmatprep.subr.mxu0 0.0
        %832 = vmatpush1.xpose.msra.mxu0 %v799
        %833 = vmatprep.subr.mxu0 0.0
        %834 = vmatpush2.xpose.msra.mxu0 0.0
        %835 = vmatprep.subr.mxu0 0.0
        %836 = vmatpush2.xpose.msra.mxu0 0.0
        %837 = vmatprep.subr.mxu0 0.0
        %838 = vmatpush2.xpose.msra.mxu0 0.0
        %839 = vmatprep.subr.mxu0 0.0
        %840 = vmatpush2.xpose.msra.mxu0 0.0
        %841 = vmatprep.subr.mxu0 0.0
        %842 = vmatpush2.xpose.msra.mxu0 0.0
        %843 = vmatprep.subr.mxu0 0.0
        %844 = vmatpush2.xpose.msra.mxu0 0.0
        %845 = vmatprep.subr.mxu0 0.0
        %846 = vmatpush2.xpose.msra.mxu0 0.0
        %847 = vmatprep.subr.mxu0 0.0
        %848 = vmatpush2.xpose.msra.mxu0 0.0
        %849 = vmatprep.subr.mxu0 0.0
        %850 = vmatpush2.xpose.msra.mxu0 0.0
        %851 = vmatprep.subr.mxu0 0.0
        %852 = vmatpush2.xpose.msra.mxu0 0.0
        %853 = vmatprep.subr.mxu0 0.0
        %854 = vmatpush2.xpose.msra.mxu0 0.0
        %855 = vmatprep.subr.mxu0 0.0
        %856 = vmatpush2.xpose.msra.mxu0 0.0
        %857 = vmatprep.subr.mxu0 0.0
        %858 = vmatpush2.xpose.msra.mxu0 0.0
        %859 = vmatprep.subr.mxu0 0.0
        %860 = vmatpush2.xpose.msra.mxu0 0.0
        %861 = vmatprep.subr.mxu0 0.0
        %862 = vmatpush2.xpose.msra.mxu0 0.0
        %863 = vmatprep.subr.mxu0 0.0
        %864 = vmatpush2.xpose.msra.mxu0 0.0
        %865 = vmatprep.mubr.f32.mxu0 0.0
        %866 = vmatmul.mubr.f32.gmra.mxu0 %v797
        %v867 = vpop.f32.mrf.mxu0
        %v868 = vadd.f32 0.0, %v867
        %v869 = vpop.f32.mrf.mxu0
        %870 = vdwg.mxu0
        %v871 = vsel %vm377, %v868, -inf
        %872 = vmax.xlane.f32.xlu0 %v871
        %v873 = vpop.xlane.xlu0 %872
        %v874 = vsub.f32 %v868, %v873
        %v875 = vmul.f32 %v874, 1.442695
        %v876 = vpow.pop %v875
        %v877 = vsel %vm377, %v876, 0.0
        %878 = vadd.xlane.f32.xlu0 %v877
        %v879 = vpop.xlane.xlu0 %878
        %v880 = vrcp.pop %v879
        %v881 = vmul.f32 %v876, %v880
        %882 = vrot.lane.b32.xlu0 %v295, 80
        %v883 = vpop.permute.xlu0 %882
        %v886 = vsel %vm377, %v881, 0
        %888 = vmatprep.subr.mxu0 0.0
        %889 = vmatpush1.msra.mxu0 0.0
        %890 = vmatprep.subr.mxu0 0.0
        %891 = vmatpush1.msra.mxu0 0.0
        %892 = vmatprep.subr.mxu0 0.0
        %893 = vmatpush1.msra.mxu0 0.0
        %894 = vmatprep.subr.mxu0 0.0
        %895 = vmatpush1.msra.mxu0 0.0
        %896 = vmatprep.subr.mxu0 0.0
        %897 = vmatpush1.msra.mxu0 0.0
        %898 = vmatprep.subr.mxu0 0.0
        %899 = vmatpush1.msra.mxu0 0.0
        %900 = vmatprep.subr.mxu0 0.0
        %901 = vmatpush1.msra.mxu0 0.0
        %902 = vmatprep.subr.mxu0 0.0
        %903 = vmatpush1.msra.mxu0 0.0
        %904 = vmatprep.subr.mxu0 0.0
        %905 = vmatpush1.msra.mxu0 0.0
        %906 = vmatprep.subr.mxu0 0.0
        %907 = vmatpush1.msra.mxu0 0.0
        %908 = vmatprep.subr.mxu0 0.0
        %909 = vmatpush1.msra.mxu0 0.0
        %910 = vmatprep.subr.mxu0 0.0
        %911 = vmatpush1.msra.mxu0 0.0
        %912 = vmatprep.subr.mxu0 0.0
        %913 = vmatpush1.msra.mxu0 0.0
        %914 = vmatprep.subr.mxu0 0.0
        %915 = vmatpush1.msra.mxu0 0.0
        %916 = vmatprep.subr.mxu0 0.0
        %917 = vmatpush1.msra.mxu0 0.0
        %918 = vmatprep.subr.mxu0 0.0
        %919 = vmatpush1.msra.mxu0 %v883
        %920 = vmatprep.subr.mxu0 0.0
        %921 = vmatpush2.msra.mxu0 0.0
        %922 = vmatprep.subr.mxu0 0.0
        %923 = vmatpush2.msra.mxu0 0.0
        %924 = vmatprep.subr.mxu0 0.0
        %925 = vmatpush2.msra.mxu0 0.0
        %926 = vmatprep.subr.mxu0 0.0
        %927 = vmatpush2.msra.mxu0 0.0
        %928 = vmatprep.subr.mxu0 0.0
        %929 = vmatpush2.msra.mxu0 0.0
        %930 = vmatprep.subr.mxu0 0.0
        %931 = vmatpush2.msra.mxu0 0.0
        %932 = vmatprep.subr.mxu0 0.0
        %933 = vmatpush2.msra.mxu0 0.0
        %934 = vmatprep.subr.mxu0 0.0
        %935 = vmatpush2.msra.mxu0 0.0
        %936 = vmatprep.subr.mxu0 0.0
        %937 = vmatpush2.msra.mxu0 0.0
        %938 = vmatprep.subr.mxu0 0.0
        %939 = vmatpush2.msra.mxu0 0.0
        %940 = vmatprep.subr.mxu0 0.0
        %941 = vmatpush2.msra.mxu0 0.0
        %942 = vmatprep.subr.mxu0 0.0
        %943 = vmatpush2.msra.mxu0 0.0
        %944 = vmatprep.subr.mxu0 0.0
        %945 = vmatpush2.msra.mxu0 0.0
        %946 = vmatprep.subr.mxu0 0.0
        %947 = vmatpush2.msra.mxu0 0.0
        %948 = vmatprep.subr.mxu0 0.0
        %949 = vmatpush2.msra.mxu0 0.0
        %950 = vmatprep.subr.mxu0 0.0
        %951 = vmatpush2.msra.mxu0 0.0
        %952 = vmatprep.mubr.f32.mxu0 0.0
        %953 = vmatmul.mubr.f32.gmra.mxu0 %v886
        %v954 = vpop.f32.mrf.mxu0
        %v955 = vadd.f32 0.0, %v954
        %v956 = vpop.f32.mrf.mxu0
        %957 = vdwg.mxu0
        %959 = vrot.lane.b32.xlu0 %v625, 16
        %v960 = vpop.permute.xlu0 %959
        %963 = vrot.lane.b32.xlu0 %v790, 32
        %v964 = vpop.permute.xlu0 %963
        %967 = vrot.lane.b32.xlu0 %v955, 48
        %v968 = vpop.permute.xlu0 %967
        %v970 = vsel %vm301, %v459, %v960
        %v971 = vsel %vm222, %v970, %v964
        %vm972 = vcmask 392192
        %v973 = vsel %vm972, %v971, %v968
        %vm974 = vcmask 523264
        %975 = vst.msk [vmem:[%s200] sm:$0xff] %vm974, %v973
        %s976 = sand.u32 %s97, 1
        %s977 = scalar_lea.sflag [#allocation4], %s976
        %s978 = sand.u32 %s97, 1
        %s979 = smul.addr %s978, 8
        %s980 = scalar_lea.vmem [#allocation7], %s979
        // Predicated region
        $region41: #{tpu_custom_call.1} parent=31 // pred_check
          %p981 = pneg %p107
        $region42: #{tpu_custom_call.1} parent=31 // pred_check_branch
          %983 = sbr.rel (%p981) target = $region44
        $region43: #{tpu_custom_call.1} parent=31 // pred_region
          %s985 = ssub.s32 128, 128
          %986 = vsyncadd %s977, %s985
          %s987 = smul.addr %s21, 128
          %s988 = scalar_lea.hbm %s3, %s987
          %s990 = sshll.u32 %s980, 4
          %s991 = int_to_ptr.vmem [resolvable:$true] %s990
          %993 = dma.vmem_to_hbm [thread:$0]  %s991, 128, %s988, %s977
        $region44: #{tpu_custom_call.1} parent=31 // pred_fallthru
          _
      $region32: #{tpu_custom_call.1} parent=5 // pred_fallthru
        _
      %p994 = scmp.le.s32.totalorder 2, %s16
      // Predicated region
      $region45: #{tpu_custom_call.1} parent=5 // pred_check
        %p995 = pneg %p994
      $region46: #{tpu_custom_call.1} parent=5 // pred_check_branch
        %997 = sbr.rel (%p995) target = $region48
      $region47: #{tpu_custom_call.1} parent=5 // pred_region
        %s998 = ssub.s32 %s16, 2
        // Predicated region
        $region49: #{tpu_custom_call.1} parent=47 // pred_check
          %p999 = pneg %p113
        $region50: #{tpu_custom_call.1} parent=47 // pred_check_branch
          %1001 = sbr.rel (%p999) target = $region52
        $region51: #{tpu_custom_call.1} parent=47 // pred_region
          %s1002 = sand.u32 %s98, 1
          %s1003 = scalar_lea.sflag [#allocation4], %s1002
          %s1004 = sand.u32 %s98, 1
          %s1005 = smul.addr %s1004, 8
          %s1006 = scalar_lea.vmem [#allocation7], %s1005
          %1007 = dma.done %s1003, 128
        $region52: #{tpu_custom_call.1} parent=47 // pred_fallthru
          _
      $region48: #{tpu_custom_call.1} parent=5 // pred_fallthru
        _
    $region6: #{tpu_custom_call.1} parent=1 // loop_footer
      %s20 = sadd.s32 1, %s16
    $region7: #{tpu_custom_call.1} parent=1 // loop_footer_branch
      %15 = sbr.rel target = $region3
    $region8: #{tpu_custom_call.1} parent=1 // loop_exit
      _
    %1008 = vsyncpa [#allocation3], 1
    %s1009 = scalar_lea.sflag [#allocation3], 1
    %1010 = vsyncpa %s1009, 1
    %1011 = vsyncpa [#allocation6], 1
    %1012 = vsyncpa [#allocation4], 1
    %s1013 = scalar_lea.sflag [#allocation4], 1
    %1014 = vsyncpa %s1013, 1

</llo_original>
